<compile_context>
chip_gen: v6e
topology: v6e:2x2x1
jax: 0.10.0
libtpu: 0.0.40
codegen_flags: <defaults>
</compile_context>

<pallas_src>
import functools

import jax
import jax.numpy as jnp
import numpy as np
from jax.experimental import pallas as pl
from jax.experimental.pallas import tpu as pltpu


def _round_up(x, m):
    return ((x + m - 1) // m) * m


def _default_act_dtype():
    """bf16 activation math only where the VPU/EUP support it (v6e/v7x)."""
    try:
        kind = jax.devices()[0].device_kind.lower()
    except Exception:
        return jnp.float32
    return jnp.bfloat16 if ("v6" in kind or "v7" in kind) else jnp.float32


# --------------------------------------------------------------------------
# Kernel
# --------------------------------------------------------------------------
def _causal_encoder_kernel(h_ref, w1_ref, b1_ref, w2_ref, b2_ref,
                           tr_ref, re_ref, *, tr_pad, act_dtype):
    # Fused first layer for both heads: (TM, D) @ (D, 2H_pad), f32 accumulation.
    # h arrives f32; cast to the weight compute dtype on-the-fly (free, VPU).
    z = jnp.dot(h_ref[...].astype(w1_ref.dtype), w1_ref[...],
                preferred_element_type=jnp.float32) + b1_ref[...]
    # SiLU (bf16 on v6e/v7x, f32 on v5e). Padded hidden columns are exactly 0.
    z = z.astype(act_dtype)
    z = z * jax.nn.sigmoid(z)
    # Block-diagonal second layer: (TM, 2H_pad) @ (2H_pad, tr_pad + re_pad).
    out = jnp.dot(z.astype(w2_ref.dtype), w2_ref[...],
                  preferred_element_type=jnp.float32) + b2_ref[...]
    # Lane-aligned split into the two per-head padded outputs.
    tr_ref[...] = out[:, :tr_pad].astype(tr_ref.dtype)
    re_ref[...] = out[:, tr_pad:].astype(re_ref.dtype)


# --------------------------------------------------------------------------
# One-time parameter packing (call once, reuse the result every forward step)
# --------------------------------------------------------------------------
def pack_causal_encoder_params(params, compute_dtype=jnp.bfloat16):
    D, H = params["w1t"].shape
    assert params["w1r"].shape == (D, H), \
        "both heads must share hidden_state_dim and hidden_dim"
    assert params["w2t"].shape[0] == H and params["w2r"].shape[0] == H
    tr_dim = params["w2t"].shape[1]
    re_dim = params["w2r"].shape[1]

    H2 = 2 * H
    H2p = _round_up(H2, 128)          # lane-dense hidden slab
    tr_pad = _round_up(tr_dim, 128)   # lane-dense per-head outputs
    re_pad = _round_up(re_dim, 128)

    # Fused first layer (D, 2H_pad); zero padding => SiLU(0)=0 contributes 0.
    w1 = jnp.zeros((D, H2p), jnp.float32)
    w1 = w1.at[:, :H].set(params["w1t"]).at[:, H:H2].set(params["w1r"])
    b1 = jnp.zeros((1, H2p), jnp.float32)
    b1 = b1.at[:, :H].set(params["b1t"]).at[:, H:H2].set(params["b1r"])

    # Block-diagonal second layer (2H_pad, tr_pad + re_pad).
    w2 = jnp.zeros((H2p, tr_pad + re_pad), jnp.float32)
    w2 = w2.at[:H, :tr_dim].set(params["w2t"])
    w2 = w2.at[H:H2, tr_pad:tr_pad + re_dim].set(params["w2r"])
    b2 = jnp.zeros((1, tr_pad + re_pad), jnp.float32)
    b2 = b2.at[:, :tr_dim].set(params["b2t"])
    b2 = b2.at[:, tr_pad:tr_pad + re_dim].set(params["b2r"])

    arrays = {
        "w1": jax.device_put(w1.astype(compute_dtype)),
        "b1": jax.device_put(b1),                       # f32, added post-matmul
        "w2": jax.device_put(w2.astype(compute_dtype)),
        "b2": jax.device_put(b2),
    }
    meta = {"tr_dim": tr_dim, "re_dim": re_dim, "tr_pad": tr_pad, "re_pad": re_pad}
    return arrays, meta


# --------------------------------------------------------------------------
# Forward
# --------------------------------------------------------------------------
@functools.partial(
    jax.jit,
    static_argnames=("tr_dim", "re_dim", "tr_pad", "re_pad",
                     "block_m", "act_dtype", "out_dtype"))
def _causal_encoder_fwd(h, w1, b1, w2, b2, *, tr_dim, re_dim, tr_pad, re_pad,
                        block_m, act_dtype, out_dtype):
    B, D = h.shape
    H2p = w1.shape[1]
    out_w = tr_pad + re_pad
    out_dtype = h.dtype if out_dtype is None else out_dtype

    # --- Batch tile ---------------------------------------------------------
    # Large tile to amortize ~0.35us/step overhead; capped at cdiv(B,2) rounded
    # to 8 so the parallel axis has >=2 steps for v7x's two TensorCores.
    if B <= 8:
        tm = B                                    # block == full array dim
    else:
        tm = max(8, min(block_m, _round_up(pl.cdiv(B, 2), 8)))
        # VMEM safety clamp (~24 MiB budget incl. double buffering + temps).
        bytes_per_row = (D * h.dtype.itemsize * 2
                         + out_w * jnp.dtype(out_dtype).itemsize * 2
                         + (H2p + out_w) * 4)
        tm_vmem = max(8, ((24 << 20) // bytes_per_row) // 8 * 8)
        tm = min(tm, tm_vmem)
    grid = (pl.cdiv(B, tm),)                      # ragged last tile is masked

    itemsize_c = jnp.dtype(w1.dtype).itemsize
    cost = pl.CostEstimate(
        flops=2 * B * (D * H2p + H2p * out_w),
        transcendentals=B * H2p,
        bytes_accessed=(B * D * h.dtype.itemsize
                        + (D * H2p + H2p * out_w) * itemsize_c
                        + (H2p + out_w) * 4
                        + B * out_w * jnp.dtype(out_dtype).itemsize),
    )

    kernel = functools.partial(_causal_encoder_kernel,
                               tr_pad=tr_pad, act_dtype=act_dtype)
    tr, re = pl.pallas_call(
        kernel,
        out_shape=(jax.ShapeDtypeStruct((B, tr_pad), out_dtype),
                   jax.ShapeDtypeStruct((B, re_pad), out_dtype)),
        grid=grid,
        in_specs=[
            pl.BlockSpec((tm, D), lambda i: (i, 0)),         # h tile (pipelined, f32)
            pl.BlockSpec((D, H2p), lambda i: (0, 0)),        # w1 (resident)
            pl.BlockSpec((1, H2p), lambda i: (0, 0)),        # b1 (resident)
            pl.BlockSpec((H2p, out_w), lambda i: (0, 0)),    # w2 (resident)
            pl.BlockSpec((1, out_w), lambda i: (0, 0)),      # b2 (resident)
        ],
        out_specs=(pl.BlockSpec((tm, tr_pad), lambda i: (i, 0)),
                   pl.BlockSpec((tm, re_pad), lambda i: (i, 0))),
        compiler_params=pltpu.CompilerParams(
            dimension_semantics=("parallel",)),
        cost_estimate=cost,
    )(h, w1, b1, w2, b2)

    # No-ops when tr_dim / re_dim are already multiples of 128.
    if tr_dim != tr_pad:
        tr = tr[:, :tr_dim]
    if re_dim != re_pad:
        re = re[:, :re_dim]
    return tr, re


def causal_encoder(h, packed, *, block_m=4096, act_dtype=None, out_dtype=None):
    """Runs both MLP heads in one fused Pallas kernel.

    h: (B, hidden_state_dim) float32.
    packed: result of pack_causal_encoder_params(params) (pack once, reuse).
    Returns (tr, re): ((B, tr_proj_dim), (B, re_proj_dim)).
    """
    arrays, meta = packed
    if act_dtype is None:
        act_dtype = _default_act_dtype()
    return _causal_encoder_fwd(
        h, arrays["w1"], arrays["b1"], arrays["w2"], arrays["b2"],
        tr_dim=meta["tr_dim"], re_dim=meta["re_dim"],
        tr_pad=meta["tr_pad"], re_pad=meta["re_pad"],
        block_m=block_m, act_dtype=act_dtype, out_dtype=out_dtype)


# --------------------------------------------------------------------------
# Test harness
# --------------------------------------------------------------------------
def _init_params(key, hidden_state_dim, tr_proj_dim, re_proj_dim, hidden_dim):
    ks = jax.random.split(key, 8)
    s_in = 1.0 / np.sqrt(hidden_state_dim)
    s_h = 1.0 / np.sqrt(hidden_dim)
    return {
        "w1t": jax.random.normal(ks[0], (hidden_state_dim, hidden_dim), jnp.float32) * s_in,
        "b1t": jax.random.normal(ks[1], (1, hidden_dim), jnp.float32) * 0.01,
        "w2t": jax.random.normal(ks[2], (hidden_dim, tr_proj_dim), jnp.float32) * s_h,
        "b2t": jax.random.normal(ks[3], (1, tr_proj_dim), jnp.float32) * 0.01,
        "w1r": jax.random.normal(ks[4], (hidden_state_dim, hidden_dim), jnp.float32) * s_in,
        "b1r": jax.random.normal(ks[5], (1, hidden_dim), jnp.float32) * 0.01,
        "w2r": jax.random.normal(ks[6], (hidden_dim, re_proj_dim), jnp.float32) * s_h,
        "b2r": jax.random.normal(ks[7], (1, re_proj_dim), jnp.float32) * 0.01,
    }


def _reference(h, p):
    def mlp(x, w1, b1, w2, b2):
        z = x @ w1 + b1
        z = z * jax.nn.sigmoid(z)
        return z @ w2 + b2
    return (mlp(h, p["w1t"], p["b1t"], p["w2t"], p["b2t"]),
            mlp(h, p["w1r"], p["b1r"], p["w2r"], p["b2r"]))


if __name__ == "__main__":
    B = 8
    hidden_state_dim = 32
    tr_proj_dim = 16
    re_proj_dim = 24
    hidden_dim = 64

    key = jax.random.PRNGKey(0)
    k_h, k_p = jax.random.split(key)
    h = jax.random.normal(k_h, (B, hidden_state_dim), jnp.float32)
    params = _init_params(k_p, hidden_state_dim, tr_proj_dim, re_proj_dim, hidden_dim)

    packed = pack_causal_encoder_params(params)        # one-time packing
    tr, re = causal_encoder(h, packed)
    jax.block_until_ready((tr, re))

    tr_ref, re_ref = _reference(h, params)
    # bf16 MXU inputs with f32 accumulation -> loosened tolerance vs f32 ref.
    np.testing.assert_allclose(np.asarray(tr, np.float32), np.asarray(tr_ref),
                               rtol=3e-2, atol=3e-2)
    np.testing.assert_allclose(np.asarray(re, np.float32), np.asarray(re_ref),
                               rtol=3e-2, atol=3e-2)

    print("KERNEL_OK")
</pallas_src>

<mosaic_0001>
module attributes {stable_mosaic.version = 11 : i64} {
  func.func @_causal_encoder_kernel(%arg0: i32, %arg1: memref<8x32xf32, #tpu.memory_space<vmem>>, %arg2: memref<32x128xbf16, #tpu.memory_space<vmem>>, %arg3: memref<1x128xf32, #tpu.memory_space<vmem>>, %arg4: memref<128x256xbf16, #tpu.memory_space<vmem>>, %arg5: memref<1x256xf32, #tpu.memory_space<vmem>>, %arg6: memref<8x128xf32, #tpu.memory_space<vmem>>, %arg7: memref<8x128xf32, #tpu.memory_space<vmem>>) attributes {dimension_semantics = [#tpu.dimension_semantics<parallel>], iteration_bounds = array<i64: 1>, scalar_prefetch = 0 : i64, scratch_operands = 0 : i64, tpu.core_type = #tpu.core_type<tc>, window_params = [{transform_indices = @transform_0, window_bounds = array<i64: 8, 32>}, {pipeline_mode = #tpu.pipeline_mode<synchronous>, transform_indices = @transform_1, window_bounds = array<i64: 32, 128>}, {pipeline_mode = #tpu.pipeline_mode<synchronous>, transform_indices = @transform_2, window_bounds = array<i64: 1, 128>}, {pipeline_mode = #tpu.pipeline_mode<synchronous>, transform_indices = @transform_3, window_bounds = array<i64: 128, 256>}, {pipeline_mode = #tpu.pipeline_mode<synchronous>, transform_indices = @transform_4, window_bounds = array<i64: 1, 256>}, {transform_indices = @transform_5, window_bounds = array<i64: 8, 128>}, {transform_indices = @transform_6, window_bounds = array<i64: 8, 128>}]} {
    %c0 = arith.constant 0 : index
    %c0_0 = arith.constant 0 : index
    %0 = vector.load %arg1[%c0, %c0_0] : memref<8x32xf32, #tpu.memory_space<vmem>>, vector<8x32xf32>
    %1 = arith.truncf %0 : vector<8x32xf32> to vector<8x32xbf16>
    %c0_1 = arith.constant 0 : index
    %c0_2 = arith.constant 0 : index
    %2 = vector.load %arg2[%c0_1, %c0_2] : memref<32x128xbf16, #tpu.memory_space<vmem>>, vector<32x128xbf16>
    %cst = arith.constant dense<0.000000e+00> : vector<8x128xf32>
    %3 = tpu.matmul %1, %2, %cst {dimension_numbers = #tpu.dot_dimension_numbers<[1], [0], [0], [1], [0, 0, 1, 1], [], []>} : vector<8x32xbf16>, vector<32x128xbf16>, vector<8x128xf32> -> vector<8x128xf32>
    %c0_3 = arith.constant 0 : index
    %c0_4 = arith.constant 0 : index
    %4 = vector.load %arg3[%c0_3, %c0_4] : memref<1x128xf32, #tpu.memory_space<vmem>>, vector<1x128xf32>
    %5 = vector.broadcast %4 : vector<1x128xf32> to vector<8x128xf32>
    %6 = arith.addf %3, %5 : vector<8x128xf32>
    %7 = arith.negf %6 : vector<8x128xf32>
    %8 = math.exp %7 : vector<8x128xf32>
    %cst_5 = arith.constant 1.000000e+00 : f32
    %9 = vector.broadcast %cst_5 : f32 to vector<8x128xf32>
    %10 = arith.addf %9, %8 : vector<8x128xf32>
    %11 = arith.divf %9, %10 : vector<8x128xf32>
    %12 = arith.mulf %6, %11 : vector<8x128xf32>
    %13 = arith.truncf %12 : vector<8x128xf32> to vector<8x128xbf16>
    %c0_6 = arith.constant 0 : index
    %c0_7 = arith.constant 0 : index
    %14 = vector.load %arg4[%c0_6, %c0_7] : memref<128x256xbf16, #tpu.memory_space<vmem>>, vector<128x256xbf16>
    %cst_8 = arith.constant dense<0.000000e+00> : vector<8x256xf32>
    %15 = tpu.matmul %13, %14, %cst_8 {dimension_numbers = #tpu.dot_dimension_numbers<[1], [0], [0], [1], [0, 0, 1, 1], [], []>} : vector<8x128xbf16>, vector<128x256xbf16>, vector<8x256xf32> -> vector<8x256xf32>
    %c0_9 = arith.constant 0 : index
    %c0_10 = arith.constant 0 : index
    %16 = vector.load %arg5[%c0_9, %c0_10] : memref<1x256xf32, #tpu.memory_space<vmem>>, vector<1x256xf32>
    %17 = vector.broadcast %16 : vector<1x256xf32> to vector<8x256xf32>
    %18 = arith.addf %15, %17 : vector<8x256xf32>
    %19 = vector.extract_strided_slice %18 {offsets = [0, 0], sizes = [8, 128], strides = [1, 1]} : vector<8x256xf32> to vector<8x128xf32>
    %c0_11 = arith.constant 0 : index
    %c0_12 = arith.constant 0 : index
    %20 = vector.load %arg6[%c0_11, %c0_12] : memref<8x128xf32, #tpu.memory_space<vmem>>, vector<8x128xf32>
    tpu.vector_store %arg6[%c0_11, %c0_12], %19 {strides = array<i32>} : memref<8x128xf32, #tpu.memory_space<vmem>>, vector<8x128xf32>,
    %21 = vector.extract_strided_slice %18 {offsets = [0, 128], sizes = [8, 128], strides = [1, 1]} : vector<8x256xf32> to vector<8x128xf32>
    %c0_13 = arith.constant 0 : index
    %c0_14 = arith.constant 0 : index
    %22 = vector.load %arg7[%c0_13, %c0_14] : memref<8x128xf32, #tpu.memory_space<vmem>>, vector<8x128xf32>
    tpu.vector_store %arg7[%c0_13, %c0_14], %21 {strides = array<i32>} : memref<8x128xf32, #tpu.memory_space<vmem>>, vector<8x128xf32>,
    return
  }
  func.func @transform_0(%arg0: i32) -> (i32, i32) {
    %c0_i32 = arith.constant 0 : i32
    %c0_i32_0 = arith.constant 0 : i32
    return %arg0, %c0_i32 : i32, i32
  }
  func.func @transform_1(%arg0: i32) -> (i32, i32) {
    %c0_i32 = arith.constant 0 : i32
    %c0_i32_0 = arith.constant 0 : i32
    %c0_i32_1 = arith.constant 0 : i32
    return %c0_i32, %c0_i32_0 : i32, i32
  }
  func.func @transform_2(%arg0: i32) -> (i32, i32) {
    %c0_i32 = arith.constant 0 : i32
    %c0_i32_0 = arith.constant 0 : i32
    %c0_i32_1 = arith.constant 0 : i32
    return %c0_i32, %c0_i32_0 : i32, i32
  }
  func.func @transform_3(%arg0: i32) -> (i32, i32) {
    %c0_i32 = arith.constant 0 : i32
    %c0_i32_0 = arith.constant 0 : i32
    %c0_i32_1 = arith.constant 0 : i32
    return %c0_i32, %c0_i32_0 : i32, i32
  }
  func.func @transform_4(%arg0: i32) -> (i32, i32) {
    %c0_i32 = arith.constant 0 : i32
    %c0_i32_0 = arith.constant 0 : i32
    %c0_i32_1 = arith.constant 0 : i32
    return %c0_i32, %c0_i32_0 : i32, i32
  }
  func.func @transform_5(%arg0: i32) -> (i32, i32) {
    %c0_i32 = arith.constant 0 : i32
    %c0_i32_0 = arith.constant 0 : i32
    return %arg0, %c0_i32 : i32, i32
  }
  func.func @transform_6(%arg0: i32) -> (i32, i32) {
    %c0_i32 = arith.constant 0 : i32
    %c0_i32_0 = arith.constant 0 : i32
    return %arg0, %c0_i32 : i32, i32
  }
}

</mosaic_0001>

<llo_original>
// kernel: _causal_encoder_fwd.1
$region0: #{_causal_encoder_fwd.1}
  #allocation0 [shape = 'u32[]', space=smem, size = 0x4, offset = 0x4, fixed_abs, tag = 'smem constant byte address 0x4 - core index']
  #allocation1 [shape = 'u32[144,128]{1,0:T(1,128)}', space=vmem, size = 0x12000, scoped, tag = 'internal scratch']
  %s0 = inlined_call_operand.hbm [shape: f32[8,32], index: 0, kind: input, shape index: {}]
  %s1 = inlined_call_operand.hbm [shape: bf16[32,128], index: 1, kind: input, shape index: {}]
  %s2 = inlined_call_operand.vmem [shape: f32[1,128], index: 2, kind: input, shape index: {}]
  %s3 = inlined_call_operand.hbm [shape: bf16[128,256], index: 3, kind: input, shape index: {}]
  %s4 = inlined_call_operand.vmem [shape: f32[1,256], index: 4, kind: input, shape index: {}]
  %s5 = inlined_call_operand.hbm [shape: f32[8,128], index: 5, kind: output, shape index: {0}]
  %s6 = inlined_call_operand.hbm [shape: f32[8,128], index: 6, kind: output, shape index: {1}]
  %7 = xla_tuple %s5, %s6
  %s8 = sld [smem:[#allocation0]]
  $region50: #{_causal_encoder_fwd.1} parent=0
    _
  %s10 = ssub.s32 1, %s8
  %s11 = scalar_select 0, %s10, %s8
  $region1: #{_causal_encoder_fwd.1} parent=0
    #allocation2 [shape = 'u8[4096]{0}', space=vmem, size = 0x1000, scoped, tag = 'input window, operand 0, single buffered']
    #allocation3 [shape = 's32[1]{0}', space=sflag, size = 0x4, scoped, tag = 'scoped memory for _causal_encoder_fwd.1']
    #allocation4 [shape = 's32[1]{0}', space=sflag, size = 0x4, scoped, tag = 'scoped memory for _causal_encoder_fwd.1']
    #allocation5 [shape = 'u8[8192]{0}', space=vmem, size = 0x2000, scoped, tag = 'input window, operand 1, single buffered']
    #allocation6 [shape = 's32[1]{0}', space=sflag, size = 0x4, scoped, tag = 'scoped memory for _causal_encoder_fwd.1']
    #allocation7 [shape = 'u8[65536]{0}', space=vmem, size = 0x10000, scoped, tag = 'input window, operand 3, single buffered']
    #allocation8 [shape = 'u8[4096]{0}', space=vmem, size = 0x1000, scoped, tag = 'output window, operand 0, single buffered']
    #allocation9 [shape = 'u8[4096]{0}', space=vmem, size = 0x1000, scoped, tag = 'output window, operand 1, single buffered']
    #allocation10 [shape = 's32[1]{0}', space=sflag, size = 0x4, scoped, tag = 'scoped memory for _causal_encoder_fwd.1']
    %12 = vsyncpa [#allocation3], 0
    %13 = vsyncpa [#allocation6], 0
    %14 = vsyncpa [#allocation4], 0
    %15 = vsyncpa [#allocation10], 0
    // Predicated region
    $region2: #{_causal_encoder_fwd.1} parent=1 // pred_check
      _
    $region3: #{_causal_encoder_fwd.1} parent=1 // pred_check_branch
      %17 = sbr.rel (0) target = $region5
    $region4: #{_causal_encoder_fwd.1} parent=1 // pred_region
      %s19 = ssub.s32 128, 128
      %20 = vsyncadd [#allocation3], %s19
      %s22 = sshll.u32 [#allocation2], 4
      %s23 = int_to_ptr.vmem [resolvable:$true] %s22
      %25 = dma.hbm_to_vmem [thread:$0]  %s0, 128, %s23, [#allocation3]
    $region5: #{_causal_encoder_fwd.1} parent=1 // pred_fallthru
      _
    // Predicated region
    $region6: #{_causal_encoder_fwd.1} parent=1 // pred_check
      _
    $region7: #{_causal_encoder_fwd.1} parent=1 // pred_check_branch
      %27 = sbr.rel (0) target = $region9
    $region8: #{_causal_encoder_fwd.1} parent=1 // pred_region
      %s29 = ssub.s32 256, 256
      %30 = vsyncadd [#allocation6], %s29
      %s31 = sshll.u32 [#allocation5], 4
      %s32 = int_to_ptr.vmem [resolvable:$true] %s31
      %37 = dma.hbm_to_vmem [thread:$0]  %s1, 256, %s32, [#allocation6], 64, 64, 4
    $region9: #{_causal_encoder_fwd.1} parent=1 // pred_fallthru
      _
    // Predicated region
    $region10: #{_causal_encoder_fwd.1} parent=1 // pred_check
      _
    $region11: #{_causal_encoder_fwd.1} parent=1 // pred_check_branch
      %39 = sbr.rel (0) target = $region13
    $region12: #{_causal_encoder_fwd.1} parent=1 // pred_region
      _
    $region13: #{_causal_encoder_fwd.1} parent=1 // pred_fallthru
      _
    // Predicated region
    $region14: #{_causal_encoder_fwd.1} parent=1 // pred_check
      _
    $region15: #{_causal_encoder_fwd.1} parent=1 // pred_check_branch
      %41 = sbr.rel (0) target = $region17
    $region16: #{_causal_encoder_fwd.1} parent=1 // pred_region
      %s43 = ssub.s32 2048, 2048
      %44 = vsyncadd [#allocation6], %s43
      %s45 = sshll.u32 [#allocation7], 4
      %s46 = int_to_ptr.vmem [resolvable:$true] %s45
      %51 = dma.hbm_to_vmem [thread:$0]  %s3, 2048, %s46, [#allocation6], 128, 128, 8
    $region17: #{_causal_encoder_fwd.1} parent=1 // pred_fallthru
      _
    // Predicated region
    $region18: #{_causal_encoder_fwd.1} parent=1 // pred_check
      _
    $region19: #{_causal_encoder_fwd.1} parent=1 // pred_check_branch
      %53 = sbr.rel (0) target = $region21
    $region20: #{_causal_encoder_fwd.1} parent=1 // pred_region
      _
    $region21: #{_causal_encoder_fwd.1} parent=1 // pred_fallthru
      _
    // Predicated region
    $region22: #{_causal_encoder_fwd.1} parent=1 // pred_check
      _
    $region23: #{_causal_encoder_fwd.1} parent=1 // pred_check_branch
      %55 = sbr.rel (0) target = $region25
    $region24: #{_causal_encoder_fwd.1} parent=1 // pred_region
      %56 = dma.done [#allocation3], 128
    $region25: #{_causal_encoder_fwd.1} parent=1 // pred_fallthru
      _
    // Predicated region
    $region26: #{_causal_encoder_fwd.1} parent=1 // pred_check
      _
    $region27: #{_causal_encoder_fwd.1} parent=1 // pred_check_branch
      %58 = sbr.rel (0) target = $region29
    $region28: #{_causal_encoder_fwd.1} parent=1 // pred_region
      %59 = dma.done [#allocation6], 256
    $region29: #{_causal_encoder_fwd.1} parent=1 // pred_fallthru
      _
    // Predicated region
    $region30: #{_causal_encoder_fwd.1} parent=1 // pred_check
      _
    $region31: #{_causal_encoder_fwd.1} parent=1 // pred_check_branch
      %61 = sbr.rel (0) target = $region33
    $region32: #{_causal_encoder_fwd.1} parent=1 // pred_region
      %62 = dma.done [#allocation6], 2048
    $region33: #{_causal_encoder_fwd.1} parent=1 // pred_fallthru
      _
    %v64 = vld [vmem:[#allocation2] sm:$0xff]
    %v65 = vpack.c.bf16 %v64, %v64
    %v66 = vld [vmem:[#allocation5] sm:$0xf]
    %v67 = vld [vmem:[#allocation5 + $0x4] sm:$0xf]
    %v68 = vld [vmem:[#allocation5 + $0x8] sm:$0xf]
    %v69 = vld [vmem:[#allocation5 + $0xc] sm:$0xf]
    %v70 = vld [vmem:[%s2] sm:$0x1]
    %v72 = vlaneseq
    %v73 = vshrl.u32 %v72, 7
    %v74 = vsub.s32 0, %v73
    %v75 = vrot.slane %v70, %v74
    %v81 = vunpack.c.l.b16 %v66
    %v82 = vunpack.c.l.b16 %v67
    %v83 = vunpack.c.l.b16 %v68
    %v84 = vunpack.c.l.b16 %v69
    %v85 = vpack.c.b16 %v82, %v81
    %v86 = vpack.c.b16 %v84, %v83
    %vm89 = vcmask 261120
    %v91 = vsel %vm89, %v65, 0
    %93 = vmatprep.subr.bf16.mxu0 0
    %94 = vmatpush1.bf16.msra.mxu0 0
    %95 = vmatprep.subr.bf16.mxu0 0
    %96 = vmatpush1.bf16.msra.mxu0 0
    %97 = vmatprep.subr.bf16.mxu0 0
    %98 = vmatpush1.bf16.msra.mxu0 0
    %99 = vmatprep.subr.bf16.mxu0 0
    %100 = vmatpush1.bf16.msra.mxu0 0
    %101 = vmatprep.subr.bf16.mxu0 0
    %102 = vmatpush1.bf16.msra.mxu0 0
    %103 = vmatprep.subr.bf16.mxu0 0
    %104 = vmatpush1.bf16.msra.mxu0 0
    %105 = vmatprep.subr.bf16.mxu0 0
    %106 = vmatpush1.bf16.msra.mxu0 %v86
    %107 = vmatprep.subr.bf16.mxu0 0
    %108 = vmatpush1.bf16.msra.mxu0 %v85
    %109 = vmatprep.subr.bf16.mxu0 0
    %110 = vmatpush2.bf16.msra.mxu0 0
    %111 = vmatprep.subr.bf16.mxu0 0
    %112 = vmatpush2.bf16.msra.mxu0 0
    %113 = vmatprep.subr.bf16.mxu0 0
    %114 = vmatpush2.bf16.msra.mxu0 0
    %115 = vmatprep.subr.bf16.mxu0 0
    %116 = vmatpush2.bf16.msra.mxu0 0
    %117 = vmatprep.subr.bf16.mxu0 0
    %118 = vmatpush2.bf16.msra.mxu0 0
    %119 = vmatprep.subr.bf16.mxu0 0
    %120 = vmatpush2.bf16.msra.mxu0 0
    %121 = vmatprep.subr.bf16.mxu0 0
    %122 = vmatpush2.bf16.msra.mxu0 0
    %123 = vmatprep.subr.bf16.mxu0 0
    %124 = vmatpush2.bf16.msra.mxu0 0
    %125 = vmatprep.mubr.bf16.mxu0 0
    %126 = vmatmul.mubr.bf16.gmra.mxu0 %v91
    %v127 = vpop.f32.mrf.mxu0
    %v128 = vadd.f32 %v75, %v127
    %v129 = vpop.f32.mrf.mxu0
    %v130 = vpop.f32.mrf.mxu0
    %v131 = vpop.f32.mrf.mxu0
    %132 = vdwg.mxu0
    %v133 = vxor.u32 %v128, 2147483648
    %v134 = vmul.f32 %v133, 1.442695
    %v135 = vpow.pop %v134
    %v136 = vadd.f32 %v135, 1.0
    %v137 = vrcp.pop %v136
    %v138 = vmul.f32 1.0, %v137
    %v139 = vmul.f32 %v128, %v138
    %v140 = vpack.c.bf16 %v139, %v139
    %v141 = vld [vmem:[#allocation7] sm:$0xff]
    %v142 = vld [vmem:[#allocation7 + $0x8] sm:$0xff]
    %v143 = vld [vmem:[#allocation7 + $0x10] sm:$0xff]
    %v144 = vld [vmem:[#allocation7 + $0x18] sm:$0xff]
    %v145 = vld [vmem:[#allocation7 + $0x20] sm:$0xff]
    %v146 = vld [vmem:[#allocation7 + $0x28] sm:$0xff]
    %v147 = vld [vmem:[#allocation7 + $0x30] sm:$0xff]
    %v148 = vld [vmem:[#allocation7 + $0x38] sm:$0xff]
    %v149 = vld [vmem:[#allocation7 + $0x40] sm:$0xff]
    %v150 = vld [vmem:[#allocation7 + $0x48] sm:$0xff]
    %v151 = vld [vmem:[#allocation7 + $0x50] sm:$0xff]
    %v152 = vld [vmem:[#allocation7 + $0x58] sm:$0xff]
    %v153 = vld [vmem:[#allocation7 + $0x60] sm:$0xff]
    %v154 = vld [vmem:[#allocation7 + $0x68] sm:$0xff]
    %v155 = vld [vmem:[#allocation7 + $0x70] sm:$0xff]
    %v156 = vld [vmem:[#allocation7 + $0x78] sm:$0xff]
    %v157 = vld [vmem:[%s4] sm:$0x3]
    %v159 = vlaneseq
    %v160 = vshrl.u32 %v159, 7
    %v161 = vsub.s32 0, %v160
    %v162 = vrot.slane %v157, %v161
    %v163 = vlaneseq
    %v164 = vshrl.u32 %v163, 7
    %v165 = vsub.s32 1, %v164
    %v166 = vrot.slane %v157, %v165
    %v185 = vunpack.c.l.b16 %v141
    %v186 = vunpack.c.h.b16 %v141
    %v187 = vunpack.c.l.b16 %v142
    %v188 = vunpack.c.h.b16 %v142
    %v189 = vunpack.c.l.b16 %v143
    %v190 = vunpack.c.h.b16 %v143
    %v191 = vunpack.c.l.b16 %v144
    %v192 = vunpack.c.h.b16 %v144
    %v193 = vunpack.c.l.b16 %v145
    %v194 = vunpack.c.h.b16 %v145
    %v195 = vunpack.c.l.b16 %v146
    %v196 = vunpack.c.h.b16 %v146
    %v197 = vunpack.c.l.b16 %v147
    %v198 = vunpack.c.h.b16 %v147
    %v199 = vunpack.c.l.b16 %v148
    %v200 = vunpack.c.h.b16 %v148
    %v201 = vunpack.c.l.b16 %v149
    %v202 = vunpack.c.h.b16 %v149
    %v203 = vunpack.c.l.b16 %v150
    %v204 = vunpack.c.h.b16 %v150
    %v205 = vunpack.c.l.b16 %v151
    %v206 = vunpack.c.h.b16 %v151
    %v207 = vunpack.c.l.b16 %v152
    %v208 = vunpack.c.h.b16 %v152
    %v209 = vunpack.c.l.b16 %v153
    %v210 = vunpack.c.h.b16 %v153
    %v211 = vunpack.c.l.b16 %v154
    %v212 = vunpack.c.h.b16 %v154
    %v213 = vunpack.c.l.b16 %v155
    %v214 = vunpack.c.h.b16 %v155
    %v215 = vunpack.c.l.b16 %v156
    %v216 = vunpack.c.h.b16 %v156
    %v217 = vpack.c.b16 %v187, %v185
    %v218 = vpack.c.b16 %v188, %v186
    %v219 = vpack.c.b16 %v191, %v189
    %v220 = vpack.c.b16 %v192, %v190
    %v221 = vpack.c.b16 %v195, %v193
    %v222 = vpack.c.b16 %v196, %v194
    %v223 = vpack.c.b16 %v199, %v197
    %v224 = vpack.c.b16 %v200, %v198
    %v225 = vpack.c.b16 %v203, %v201
    %v226 = vpack.c.b16 %v204, %v202
    %v227 = vpack.c.b16 %v207, %v205
    %v228 = vpack.c.b16 %v208, %v206
    %v229 = vpack.c.b16 %v211, %v209
    %v230 = vpack.c.b16 %v212, %v210
    %v231 = vpack.c.b16 %v215, %v213
    %v232 = vpack.c.b16 %v216, %v214
    %249 = vmatprep.subr.bf16.mxu0 %v232
    %250 = vmatpush1.bf16.msra.mxu0 %v231
    %251 = vmatprep.subr.bf16.mxu0 %v230
    %252 = vmatpush1.bf16.msra.mxu0 %v229
    %253 = vmatprep.subr.bf16.mxu0 %v228
    %254 = vmatpush1.bf16.msra.mxu0 %v227
    %255 = vmatprep.subr.bf16.mxu0 %v226
    %256 = vmatpush1.bf16.msra.mxu0 %v225
    %257 = vmatprep.subr.bf16.mxu0 %v224
    %258 = vmatpush1.bf16.msra.mxu0 %v223
    %259 = vmatprep.subr.bf16.mxu0 %v222
    %260 = vmatpush1.bf16.msra.mxu0 %v221
    %261 = vmatprep.subr.bf16.mxu0 %v220
    %262 = vmatpush1.bf16.msra.mxu0 %v219
    %263 = vmatprep.subr.bf16.mxu0 %v218
    %264 = vmatpush1.bf16.msra.mxu0 %v217
    %265 = vmatprep.subr.bf16.mxu0 0
    %266 = vmatpush2.bf16.msra.mxu0 0
    %267 = vmatprep.subr.bf16.mxu0 0
    %268 = vmatpush2.bf16.msra.mxu0 0
    %269 = vmatprep.subr.bf16.mxu0 0
    %270 = vmatpush2.bf16.msra.mxu0 0
    %271 = vmatprep.subr.bf16.mxu0 0
    %272 = vmatpush2.bf16.msra.mxu0 0
    %273 = vmatprep.subr.bf16.mxu0 0
    %274 = vmatpush2.bf16.msra.mxu0 0
    %275 = vmatprep.subr.bf16.mxu0 0
    %276 = vmatpush2.bf16.msra.mxu0 0
    %277 = vmatprep.subr.bf16.mxu0 0
    %278 = vmatpush2.bf16.msra.mxu0 0
    %279 = vmatprep.subr.bf16.mxu0 0
    %280 = vmatpush2.bf16.msra.mxu0 0
    %281 = vmatprep.mubr.bf16.mxu0 0
    %282 = vmatmul.mubr.bf16.gmra.mxu0 %v140
    %v283 = vpop.f32.mrf.mxu0
    %v284 = vadd.f32 %v162, %v283
    %v285 = vpop.f32.mrf.mxu0
    %v286 = vadd.f32 %v166, %v285
    %v287 = vpop.f32.mrf.mxu0
    %v288 = vpop.f32.mrf.mxu0
    %289 = vdwg.mxu0
    %290 = vst [vmem:[#allocation8] sm:$0xff] %v284
    %291 = vst [vmem:[#allocation9] sm:$0xff] %v286
    // Predicated region
    $region34: #{_causal_encoder_fwd.1} parent=1 // pred_check
      _
    $region35: #{_causal_encoder_fwd.1} parent=1 // pred_check_branch
      %293 = sbr.rel (0) target = $region37
    $region36: #{_causal_encoder_fwd.1} parent=1 // pred_region
      %s295 = ssub.s32 128, 128
      %296 = vsyncadd [#allocation4], %s295
      %s298 = sshll.u32 [#allocation8], 4
      %s299 = int_to_ptr.vmem [resolvable:$true] %s298
      %301 = dma.vmem_to_hbm [thread:$0]  %s299, 128, %s5, [#allocation4]
    $region37: #{_causal_encoder_fwd.1} parent=1 // pred_fallthru
      _
    // Predicated region
    $region38: #{_causal_encoder_fwd.1} parent=1 // pred_check
      _
    $region39: #{_causal_encoder_fwd.1} parent=1 // pred_check_branch
      %303 = sbr.rel (0) target = $region41
    $region40: #{_causal_encoder_fwd.1} parent=1 // pred_region
      %s305 = ssub.s32 128, 128
      %306 = vsyncadd [#allocation10], %s305
      %s308 = sshll.u32 [#allocation9], 4
      %s309 = int_to_ptr.vmem [resolvable:$true] %s308
      %311 = dma.vmem_to_hbm [thread:$0]  %s309, 128, %s6, [#allocation10]
    $region41: #{_causal_encoder_fwd.1} parent=1 // pred_fallthru
      _
    // Predicated region
    $region42: #{_causal_encoder_fwd.1} parent=1 // pred_check
      _
    $region43: #{_causal_encoder_fwd.1} parent=1 // pred_check_branch
      %313 = sbr.rel (0) target = $region45
    $region44: #{_causal_encoder_fwd.1} parent=1 // pred_region
      %314 = dma.done [#allocation4], 128
    $region45: #{_causal_encoder_fwd.1} parent=1 // pred_fallthru
      _
    // Predicated region
    $region46: #{_causal_encoder_fwd.1} parent=1 // pred_check
      _
    $region47: #{_causal_encoder_fwd.1} parent=1 // pred_check_branch
      %316 = sbr.rel (0) target = $region49
    $region48: #{_causal_encoder_fwd.1} parent=1 // pred_region
      %317 = dma.done [#allocation10], 128
    $region49: #{_causal_encoder_fwd.1} parent=1 // pred_fallthru
      _
    %318 = vsyncpa [#allocation3], 1
    %319 = vsyncpa [#allocation6], 1
    %320 = vsyncpa [#allocation4], 1
    %321 = vsyncpa [#allocation10], 1

</llo_original>
